<compile_context>
chip_gen: v7x
topology: tpu7x:2x2x1
jax: 0.10.0
libtpu: 0.0.40
codegen_flags: <defaults>
</compile_context>

<pallas_src>
import jax
import jax.numpy as jnp
from jax.experimental import pallas as pl
from jax.experimental.pallas import tpu as pltpu


def make_divisible(v, divisor=8, min_value=None):
    if min_value is None:
        min_value = divisor
    new_v = max(min_value, int(v + divisor / 2) // divisor * divisor)
    if new_v < 0.9 * v:
        new_v += divisor
    return new_v


def _round_up(x, m):
    return (x + m - 1) // m * m


def _vmem_limit_bytes():
    """~3/4 of physical VMEM, capped at 64 MiB (safe on v5e/v6e/v7x)."""
    try:
        cap = pltpu.get_tpu_info().vmem_capacity_bytes
    except Exception:
        cap = 64 * 1024 * 1024          # conservative fallback (v7x-sized)
    return min(64 * 1024 * 1024, (cap * 3) // 4)


def _tile_plan(R, S, itemsize, vmem_limit):
    """Pick (tile_rows, tile_lanes) for the (R, S) broadcast multiply."""
    row_align = max(8, (8 * 4) // itemsize)      # sublane packing: 8 f32, 16 bf16
    block_budget = vmem_limit // 8               # 4 live blocks (x,out double-buffered)
                                                 # stay well under half the limit

    # Lane tiling: prefer the full row (one contiguous HBM slab per block).
    # Only split the lane axis when S is 128-aligned AND a minimal-row block
    # would blow the budget.  For non-128-multiple S the block lane extent
    # MUST equal the full S (Mosaic rule) -- which also keeps HBM traffic exact.
    if S % 128 == 0 and row_align * S * itemsize > block_budget:
        tile_lanes = max(128, (block_budget // (row_align * itemsize)) // 128 * 128)
    else:
        tile_lanes = S
    lane_steps = pl.cdiv(S, tile_lanes)

    # Row tiling: as big as the VMEM budget allows (VMEM lane extent is padded
    # to 128), but keep >= ~8 total grid steps on large inputs so the pipeline
    # and the v7x 2-TC megacore split stay fed.
    MIN_STEPS = 8
    lanes_vmem = _round_up(tile_lanes, 128)
    rows_fit = max(row_align,
                   (block_budget // (lanes_vmem * itemsize)) // row_align * row_align)
    want_row_steps = max(1, MIN_STEPS // lane_steps)
    rows_for_steps = _round_up(pl.cdiv(R, want_row_steps), row_align)
    tile_rows = max(row_align, min(rows_fit, rows_for_steps))
    if tile_rows >= R:
        tile_rows = R          # full dim is always a legal block extent
    return tile_rows, tile_lanes


# ---------------------------------------------------------------------------
# Main kernel: HBM-bound broadcast multiply on a (B*C, S) slab.
#   x_ref: (tile_rows, tile_lanes) rows of the (B*C, S) activation
#   s_ref: (tile_rows, 1)          per-row (i.e. per (b, c)) gate, x.dtype
# ---------------------------------------------------------------------------
def scale_mul_kernel(x_ref, s_ref, o_ref):
    o_ref[...] = x_ref[...] * s_ref[...]


def scale_multiply(x_rows, scale_rows, *, tile_rows, tile_lanes, vmem_limit):
    R, S = x_rows.shape
    itemsize = jnp.dtype(x_rows.dtype).itemsize
    grid = (pl.cdiv(R, tile_rows), pl.cdiv(S, tile_lanes))
    cost = pl.CostEstimate(
        flops=R * S,
        transcendentals=0,
        bytes_accessed=2 * R * S * itemsize + R * itemsize,
    )
    return pl.pallas_call(
        scale_mul_kernel,
        out_shape=jax.ShapeDtypeStruct((R, S), x_rows.dtype),
        grid_spec=pltpu.PrefetchScalarGridSpec(
            num_scalar_prefetch=0,
            grid=grid,
            in_specs=[
                pl.BlockSpec((tile_rows, tile_lanes), lambda r, s: (r, s)),
                pl.BlockSpec((tile_rows, 1), lambda r, s: (r, 0)),
            ],
            out_specs=pl.BlockSpec((tile_rows, tile_lanes), lambda r, s: (r, s)),
        ),
        compiler_params=pltpu.CompilerParams(
            dimension_semantics=("parallel", "parallel"),
            vmem_limit_bytes=vmem_limit,
        ),
        cost_estimate=cost,
    )(x_rows, scale_rows)


# ---------------------------------------------------------------------------
# Full forward (NCHW in / NCHW out)
# ---------------------------------------------------------------------------
def moc_attention_nchw(x_nchw, w1, b1, w2, b2):
    """x: (B, C, H, W); w1: (C, Hid); b1: (1, Hid); w2: (Hid, C); b2: (1, C)."""
    B, C, H, W = x_nchw.shape
    S = H * W
    R = B * C

    # --- SE gate in plain JAX (negligible FLOPs; f32 math, native-dtype out) -
    # AdaptiveAvgPool2d(1): true H*W divisor, f32 accumulation fused into the
    # reduce (no materialized f32 copy of x).
    pooled = jnp.mean(x_nchw, axis=(2, 3), dtype=jnp.float32)            # (B, C)
    h = jnp.maximum(pooled @ w1.astype(jnp.float32)
                    + b1.astype(jnp.float32), 0.0)                       # (B, Hid)
    scale = jax.nn.sigmoid(h @ w2.astype(jnp.float32)
                           + b2.astype(jnp.float32))                     # (B, C)
    scale_rows = scale.astype(x_nchw.dtype).reshape(R, 1)                # native dtype

    # --- HBM-bound broadcast multiply: no padding, no output slice ----------
    itemsize = jnp.dtype(x_nchw.dtype).itemsize
    vmem_limit = _vmem_limit_bytes()
    tile_rows, tile_lanes = _tile_plan(R, S, itemsize, vmem_limit)

    x_rows = x_nchw.reshape(R, S)          # free view of contiguous NCHW
    out = scale_multiply(x_rows, scale_rows,
                         tile_rows=tile_rows, tile_lanes=tile_lanes,
                         vmem_limit=vmem_limit)
    return out.reshape(B, C, H, W)


# ---------------------------------------------------------------------------
# Pure-JAX reference (eval path of the PyTorch module)
# ---------------------------------------------------------------------------
def reference_nchw(x_nchw, w1, b1, w2, b2):
    pooled = jnp.mean(x_nchw.astype(jnp.float32), axis=(2, 3))           # (B, C)
    h = jnp.maximum(pooled @ w1.astype(jnp.float32)
                    + b1.astype(jnp.float32), 0.0)                       # (B, Hid)
    s = jax.nn.sigmoid(h @ w2.astype(jnp.float32)
                       + b2.astype(jnp.float32))                         # (B, C)
    return (x_nchw.astype(jnp.float32)
            * s[:, :, None, None]).astype(x_nchw.dtype)


if __name__ == "__main__":
    # Small shapes consistent with the module: InChannels=4, SqueezeFactor=4
    B, C, H, W = 2, 4, 16, 16
    Hid = max(make_divisible(C // 4, 8), 32)              # -> 32

    key = jax.random.PRNGKey(0)
    kx, kw1, kb1, kw2, kb2 = jax.random.split(key, 5)

    x = jax.random.normal(kx, (B, C, H, W), dtype=jnp.float32)
    # Deterministic synthetic SE-layer params (1x1 conv weights as matrices).
    w1 = jax.random.normal(kw1, (C, Hid), dtype=jnp.float32) * 0.1   # C -> Hid
    b1 = jax.random.normal(kb1, (1, Hid), dtype=jnp.float32) * 0.1
    w2 = jax.random.normal(kw2, (Hid, C), dtype=jnp.float32) * 0.1   # Hid -> C
    b2 = jax.random.normal(kb2, (1, C), dtype=jnp.float32) * 0.1

    # --- primary check: f32, lane-aligned spatial (S = 256) -----------------
    out = jax.block_until_ready(moc_attention_nchw(x, w1, b1, w2, b2))
    ref = reference_nchw(x, w1, b1, w2, b2)
    assert out.shape == (B, C, H, W)
    assert jnp.allclose(out, ref, atol=1e-5, rtol=1e-5)

    # --- ragged-lane check: odd spatial size (S = 49, full-dim lane block) --
    x_odd = jax.random.normal(kx, (B, C, 7, 7), dtype=jnp.float32)
    out_odd = jax.block_until_ready(moc_attention_nchw(x_odd, w1, b1, w2, b2))
    ref_odd = reference_nchw(x_odd, w1, b1, w2, b2)
    assert jnp.allclose(out_odd, ref_odd, atol=1e-5, rtol=1e-5)

    # --- bf16 smoke check (native-dtype multiply, f32 gate math) ------------
    x_bf = x.astype(jnp.bfloat16)
    out_bf = jax.block_until_ready(moc_attention_nchw(x_bf, w1, b1, w2, b2))
    ref_bf = reference_nchw(x_bf, w1, b1, w2, b2)
    assert out_bf.dtype == jnp.bfloat16
    assert jnp.allclose(out_bf.astype(jnp.float32),
                        ref_bf.astype(jnp.float32), atol=2e-2, rtol=2e-2)

    # TODO(synk): the training-mode Monte-Carlo pooling path (np.random.choice
    # of pool resolution + torch.randperm shuffle) is stochastic host-side
    # control flow; only the deterministic eval path (global avg pool) is
    # implemented.
    print("KERNEL_OK")
</pallas_src>

<mosaic_0001>
module attributes {stable_mosaic.version = 11 : i64} {
  func.func @scale_mul_kernel(%arg0: i32, %arg1: i32, %arg2: memref<8x256xf32, #tpu.memory_space<vmem>>, %arg3: memref<8x1xf32, #tpu.memory_space<vmem>>, %arg4: memref<8x256xf32, #tpu.memory_space<vmem>>) attributes {dimension_semantics = [#tpu.dimension_semantics<parallel>, #tpu.dimension_semantics<parallel>], iteration_bounds = array<i64: 1, 1>, scalar_prefetch = 0 : i64, scratch_operands = 0 : i64, tpu.core_type = #tpu.core_type<tc>, window_params = [{transform_indices = @transform_0, window_bounds = array<i64: 8, 256>}, {transform_indices = @transform_1, window_bounds = array<i64: 8, 1>}, {transform_indices = @transform_2, window_bounds = array<i64: 8, 256>}]} {
    %c0 = arith.constant 0 : index
    %c0_0 = arith.constant 0 : index
    %0 = vector.load %arg2[%c0, %c0_0] : memref<8x256xf32, #tpu.memory_space<vmem>>, vector<8x256xf32>
    %c0_1 = arith.constant 0 : index
    %c0_2 = arith.constant 0 : index
    %1 = vector.load %arg3[%c0_1, %c0_2] : memref<8x1xf32, #tpu.memory_space<vmem>>, vector<8x1xf32>
    %2 = vector.broadcast %1 : vector<8x1xf32> to vector<8x256xf32>
    %3 = arith.mulf %0, %2 : vector<8x256xf32>
    %c0_3 = arith.constant 0 : index
    %c0_4 = arith.constant 0 : index
    %4 = vector.load %arg4[%c0_3, %c0_4] : memref<8x256xf32, #tpu.memory_space<vmem>>, vector<8x256xf32>
    tpu.vector_store %arg4[%c0_3, %c0_4], %3 {strides = array<i32>} : memref<8x256xf32, #tpu.memory_space<vmem>>, vector<8x256xf32>,
    return
  }
  func.func @transform_0(%arg0: i32, %arg1: i32) -> (i32, i32) {
    %c0_i32 = arith.constant 0 : i32
    return %arg0, %arg1 : i32, i32
  }
  func.func @transform_1(%arg0: i32, %arg1: i32) -> (i32, i32) {
    %c0_i32 = arith.constant 0 : i32
    %c0_i32_0 = arith.constant 0 : i32
    return %arg0, %c0_i32 : i32, i32
  }
  func.func @transform_2(%arg0: i32, %arg1: i32) -> (i32, i32) {
    %c0_i32 = arith.constant 0 : i32
    return %arg0, %arg1 : i32, i32
  }
}

</mosaic_0001>

<llo_original>
// kernel: tpu_custom_call.1
$region0: #{tpu_custom_call.1}
  #allocation0 [shape = 'u32[]', space=smem, size = 0x4, offset = 0x4, fixed_abs, tag = 'smem constant byte address 0x4 - core index']
  #allocation1 [shape = 'u32[144,128]{1,0:T(1,128)}', space=vmem, size = 0x12000, scoped, tag = 'internal scratch']
  %s0 = inlined_call_operand.hbm [shape: f32[8,256], index: 0, kind: input, shape index: {}]
  %s1 = inlined_call_operand.vmem [shape: f32[8,1], index: 1, kind: input, shape index: {}]
  %s2 = inlined_call_operand.hbm [shape: f32[8,256], index: 2, kind: output, shape index: {}]
  %s3 = sld [smem:[#allocation0]]
  $region22: #{tpu_custom_call.1} parent=0
    _
  %s5 = ssub.s32 1, %s3
  %s6 = scalar_select 0, %s5, %s3
  $region1: #{tpu_custom_call.1} parent=0
    #allocation2 [shape = 'u8[8192]{0}', space=vmem, size = 0x2000, scoped, tag = 'input window, operand 0, single buffered']
    #allocation3 [shape = 's32[1]{0}', space=sflag, size = 0x4, scoped, tag = 'scoped memory for tpu_custom_call.1']
    #allocation4 [shape = 's32[1]{0}', space=sflag, size = 0x4, scoped, tag = 'scoped memory for tpu_custom_call.1']
    #allocation5 [shape = 'u8[8192]{0}', space=vmem, size = 0x2000, scoped, tag = 'output window, operand 0, single buffered']
    %7 = vsyncpa [#allocation3], 0
    %8 = vsyncpa [#allocation4], 0
    // Predicated region
    $region2: #{tpu_custom_call.1} parent=1 // pred_check
      _
    $region3: #{tpu_custom_call.1} parent=1 // pred_check_branch
      %10 = sbr.rel (0) target = $region5
    $region4: #{tpu_custom_call.1} parent=1 // pred_region
      %s12 = ssub.s32 256, 256
      %13 = vsyncadd [#allocation3], %s12
      %s15 = sshll.u32 [#allocation2], 4
      %s16 = int_to_ptr.vmem [resolvable:$true] %s15
      %18 = dma.hbm_to_vmem [thread:$0]  %s0, 256, %s16, [#allocation3]
    $region5: #{tpu_custom_call.1} parent=1 // pred_fallthru
      _
    // Predicated region
    $region6: #{tpu_custom_call.1} parent=1 // pred_check
      _
    $region7: #{tpu_custom_call.1} parent=1 // pred_check_branch
      %20 = sbr.rel (0) target = $region9
    $region8: #{tpu_custom_call.1} parent=1 // pred_region
      _
    $region9: #{tpu_custom_call.1} parent=1 // pred_fallthru
      _
    // Predicated region
    $region10: #{tpu_custom_call.1} parent=1 // pred_check
      _
    $region11: #{tpu_custom_call.1} parent=1 // pred_check_branch
      %22 = sbr.rel (0) target = $region13
    $region12: #{tpu_custom_call.1} parent=1 // pred_region
      %23 = dma.done [#allocation3], 256
    $region13: #{tpu_custom_call.1} parent=1 // pred_fallthru
      _
    %v24 = vld [vmem:[#allocation2] sm:$0xff]
    %v25 = vld [vmem:[#allocation2 + $0x8] sm:$0xff]
    %v26 = vld [vmem:[%s1] sm:$0xff]
    %28 = vset.pattern.permute.xlu0 0
    %29 = vperm.xlu0 %28, %v26
    %v30 = vpop.permute.xlu0 %29
    %v32 = vmul.f32 %v24, %v30
    %v33 = vmul.f32 %v25, %v30
    %34 = vst [vmem:[#allocation5] sm:$0xff] %v32
    %35 = vst [vmem:[#allocation5 + $0x8] sm:$0xff] %v33
    // Predicated region
    $region14: #{tpu_custom_call.1} parent=1 // pred_check
      _
    $region15: #{tpu_custom_call.1} parent=1 // pred_check_branch
      %37 = sbr.rel (0) target = $region17
    $region16: #{tpu_custom_call.1} parent=1 // pred_region
      %s39 = ssub.s32 256, 256
      %40 = vsyncadd [#allocation4], %s39
      %s42 = sshll.u32 [#allocation5], 4
      %s43 = int_to_ptr.vmem [resolvable:$true] %s42
      %45 = dma.vmem_to_hbm [thread:$0]  %s43, 256, %s2, [#allocation4]
    $region17: #{tpu_custom_call.1} parent=1 // pred_fallthru
      _
    // Predicated region
    $region18: #{tpu_custom_call.1} parent=1 // pred_check
      _
    $region19: #{tpu_custom_call.1} parent=1 // pred_check_branch
      %47 = sbr.rel (0) target = $region21
    $region20: #{tpu_custom_call.1} parent=1 // pred_region
      %48 = dma.done [#allocation4], 256
    $region21: #{tpu_custom_call.1} parent=1 // pred_fallthru
      _
    %49 = vsyncpa [#allocation3], 1
    %50 = vsyncpa [#allocation4], 1

</llo_original>
